<compile_context>
chip_gen: v5e
topology: v5e:2x2
jax: 0.10.0
libtpu: 0.0.40
codegen_flags: <defaults>
</compile_context>

<pallas_src>
import functools

import jax
import jax.numpy as jnp
from jax import lax
from jax.experimental import pallas as pl
from jax.experimental.pallas import tpu as pltpu


def _round_up(n, m):
    return pl.cdiv(n, m) * m


def qnet_kernel(x_ref, w1_ref, b1_ref, w2_ref, b2_ref, w34_ref, b34_ref,
                out_ref, *, out_size):
    # x arrives f32; cast to bf16 right before the first MXU op (the VPU cast
    # rides behind the input DMA instead of costing a separate HBM pass).
    x = x_ref[...].astype(jnp.bfloat16)

    # hidden = relu(linear1(x))          (bf16 MXU operands, f32 accumulate)
    h = jnp.dot(x, w1_ref[...], preferred_element_type=jnp.float32) + b1_ref[...]
    h = jnp.maximum(h, 0.0)

    # hidden = relu(linear2(hidden))
    h = jnp.dot(h.astype(jnp.bfloat16), w2_ref[...],
                preferred_element_type=jnp.float32) + b2_ref[...]
    h = jnp.maximum(h, 0.0)

    # Fused, lane-padded heads: y[:, :out_size] = advantage, y[:, out_size] =
    # value, remaining (zero-weight) lanes carry junk that the wrapper slices off.
    y = jnp.dot(h.astype(jnp.bfloat16), w34_ref[...],
                preferred_element_type=jnp.float32) + b34_ref[...]

    # Mask-based extraction keeps everything 128-lane dense (no narrow slices);
    # the advantage mean is taken over the real out_size columns only.
    lane = lax.broadcasted_iota(jnp.int32, y.shape, 1)
    adv_sum = jnp.sum(jnp.where(lane < out_size, y, 0.0), axis=-1, keepdims=True)
    adv_mean = adv_sum * (1.0 / out_size)
    val = jnp.sum(jnp.where(lane == out_size, y, 0.0), axis=-1, keepdims=True)

    # qvalue = value + advantage - advantage.mean(-1, keepdim=True)
    # (padded lanes hold val - adv_mean; discarded by the wrapper slice)
    out_ref[...] = (y + val - adv_mean).astype(out_ref.dtype)


def prepare_params(params):
    """One-time prep (per parameter update, NOT per forward): fuse the
    advantage/value heads, zero-pad to a 128-lane-dense output width, and cast
    MXU operands to bf16.  Biases stay f32 for the f32 epilogue."""
    w1, b1, w2, b2, w3, b3, w4, b4 = params
    hidden = w3.shape[0]
    out_size = w3.shape[1]
    head = _round_up(out_size + 1, 128)          # lane-dense output width

    w34 = jnp.zeros((hidden, head), jnp.float32)
    w34 = w34.at[:, :out_size].set(w3).at[:, out_size:out_size + 1].set(w4)
    b34 = jnp.zeros((1, head), jnp.float32)
    b34 = b34.at[:, :out_size].set(b3).at[:, out_size:out_size + 1].set(b4)

    return dict(
        w1=w1.astype(jnp.bfloat16), b1=b1.astype(jnp.float32),
        w2=w2.astype(jnp.bfloat16), b2=b2.astype(jnp.float32),
        w34=w34.astype(jnp.bfloat16), b34=b34,
        out_size=out_size, head=head,
    )


def linear_qnet_forward(x, prep, *, batch_tile_cap=4096):
    """x: [B, input_size] f32. Returns [B, output_size] f32 Q-values."""
    B, in_size = x.shape
    out_size, head = prep["out_size"], prep["head"]

    # Single grid step for moderate B: tile = round_up(B, 16) (bf16 sublane
    # packing), capped so huge replay-buffer batches still pipeline.  Even at
    # the 4096-row cap the double-buffered x/out tiles stay well under VMEM
    # limits on every generation (including v7x's 64 MiB).
    bt = min(batch_tile_cap, _round_up(max(B, 1), 16))
    pad_B = _round_up(B, bt)
    if pad_B != B:
        x = jnp.pad(x, ((0, pad_B - B), (0, 0)))
    grid = (pad_B // bt,)

    # Weights/biases resident in VMEM across the batch grid (constant index_map).
    resident = lambda a: pl.BlockSpec(a.shape, lambda i: (0,) * a.ndim)

    out = pl.pallas_call(
        functools.partial(qnet_kernel, out_size=out_size),
        out_shape=jax.ShapeDtypeStruct((pad_B, head), jnp.float32),
        grid=grid,
        in_specs=[
            pl.BlockSpec((bt, in_size), lambda i: (i, 0)),   # x: batch-tiled, f32
            resident(prep["w1"]), resident(prep["b1"]),
            resident(prep["w2"]), resident(prep["b2"]),
            resident(prep["w34"]), resident(prep["b34"]),
        ],
        out_specs=pl.BlockSpec((bt, head), lambda i: (i, 0)),
        # Grid is usually a single step; "arbitrary" is fine (parallel vs.
        # arbitrary is a measured no-op on 1-TC chips).
        compiler_params=pltpu.CompilerParams(
            dimension_semantics=("arbitrary",)),
    )(x, prep["w1"], prep["b1"], prep["w2"], prep["b2"],
      prep["w34"], prep["b34"])

    return out[:B, :out_size]


def init_params(key, input_size, hidden_size, output_size):
    # Deterministic PyTorch-style init: U(-1/sqrt(fan_in), 1/sqrt(fan_in)).
    def linear(key, fan_in, fan_out):
        kw, kb = jax.random.split(key)
        bound = 1.0 / jnp.sqrt(jnp.float32(fan_in))
        # stored as [in, out] (transposed relative to torch's [out, in])
        w = jax.random.uniform(kw, (fan_in, fan_out), jnp.float32, -bound, bound)
        b = jax.random.uniform(kb, (1, fan_out), jnp.float32, -bound, bound)
        return w, b

    k1, k2, k3, k4 = jax.random.split(key, 4)
    w1, b1 = linear(k1, input_size, hidden_size)
    w2, b2 = linear(k2, hidden_size, hidden_size)
    w3, b3 = linear(k3, hidden_size, output_size)
    w4, b4 = linear(k4, hidden_size, 1)
    return (w1, b1, w2, b2, w3, b3, w4, b4)


def reference_forward(x, params):
    # Pure-f32 JAX reference of the PyTorch forward.
    w1, b1, w2, b2, w3, b3, w4, b4 = params
    h = jax.nn.relu(x @ w1 + b1)
    h = jax.nn.relu(h @ w2 + b2)
    adv = h @ w3 + b3
    val = h @ w4 + b4
    return val + adv - jnp.mean(adv, axis=-1, keepdims=True)


if __name__ == "__main__":
    # LunarLander-ish sizes, kept small: obs dim 8, hidden 32, 4 actions.
    batch, input_size, hidden_size, output_size = 2, 8, 32, 4

    key = jax.random.PRNGKey(0)
    kx, kp, kx2 = jax.random.split(key, 3)
    params = init_params(kp, input_size, hidden_size, output_size)
    prep = prepare_params(params)        # one-time weight prep (hoisted)

    # Small batch (matches the RL inference shape): single 16-row tile.
    x = jax.random.normal(kx, (batch, input_size), dtype=jnp.float32)
    q = jax.block_until_ready(linear_qnet_forward(x, prep))
    q_ref = reference_forward(x, params)
    assert q.shape == (batch, output_size)
    # bf16 MXU operands with f32 accumulation -> loosened tolerance vs f32 ref.
    assert jnp.allclose(q, q_ref, atol=5e-2, rtol=5e-2), "mismatch vs JAX reference (B=2)"

    # Larger, non-multiple batch: single 304-row tile (no wasted rows, 1 step).
    x_big = jax.random.normal(kx2, (300, input_size), dtype=jnp.float32)
    q_big = jax.block_until_ready(linear_qnet_forward(x_big, prep))
    q_big_ref = reference_forward(x_big, params)
    assert q_big.shape == (300, output_size)
    assert jnp.allclose(q_big, q_big_ref, atol=5e-2, rtol=5e-2), "mismatch vs JAX reference (B=300)"

    print("KERNEL_OK")
</pallas_src>

<mosaic_0001>
module attributes {stable_mosaic.version = 11 : i64} {
  func.func @qnet_kernel(%arg0: i32, %arg1: memref<16x8xf32, #tpu.memory_space<vmem>>, %arg2: memref<8x32xbf16, #tpu.memory_space<vmem>>, %arg3: memref<1x32xf32, #tpu.memory_space<vmem>>, %arg4: memref<32x32xbf16, #tpu.memory_space<vmem>>, %arg5: memref<1x32xf32, #tpu.memory_space<vmem>>, %arg6: memref<32x128xbf16, #tpu.memory_space<vmem>>, %arg7: memref<1x128xf32, #tpu.memory_space<vmem>>, %arg8: memref<16x128xf32, #tpu.memory_space<vmem>>) attributes {dimension_semantics = [#tpu.dimension_semantics<arbitrary>], iteration_bounds = array<i64: 1>, scalar_prefetch = 0 : i64, scratch_operands = 0 : i64, tpu.core_type = #tpu.core_type<tc>, window_params = [{transform_indices = @transform_0, window_bounds = array<i64: 16, 8>}, {pipeline_mode = #tpu.pipeline_mode<synchronous>, transform_indices = @transform_1, window_bounds = array<i64: 8, 32>}, {pipeline_mode = #tpu.pipeline_mode<synchronous>, transform_indices = @transform_2, window_bounds = array<i64: 1, 32>}, {pipeline_mode = #tpu.pipeline_mode<synchronous>, transform_indices = @transform_3, window_bounds = array<i64: 32, 32>}, {pipeline_mode = #tpu.pipeline_mode<synchronous>, transform_indices = @transform_4, window_bounds = array<i64: 1, 32>}, {pipeline_mode = #tpu.pipeline_mode<synchronous>, transform_indices = @transform_5, window_bounds = array<i64: 32, 128>}, {pipeline_mode = #tpu.pipeline_mode<synchronous>, transform_indices = @transform_6, window_bounds = array<i64: 1, 128>}, {transform_indices = @transform_7, window_bounds = array<i64: 16, 128>}]} {
    %c0 = arith.constant 0 : index
    %c0_0 = arith.constant 0 : index
    %0 = vector.load %arg1[%c0, %c0_0] : memref<16x8xf32, #tpu.memory_space<vmem>>, vector<16x8xf32>
    %1 = arith.truncf %0 : vector<16x8xf32> to vector<16x8xbf16>
    %c0_1 = arith.constant 0 : index
    %c0_2 = arith.constant 0 : index
    %2 = vector.load %arg2[%c0_1, %c0_2] : memref<8x32xbf16, #tpu.memory_space<vmem>>, vector<8x32xbf16>
    %cst = arith.constant dense<0.000000e+00> : vector<16x32xf32>
    %3 = tpu.matmul %1, %2, %cst {dimension_numbers = #tpu.dot_dimension_numbers<[1], [0], [0], [1], [0, 0, 1, 1], [], []>} : vector<16x8xbf16>, vector<8x32xbf16>, vector<16x32xf32> -> vector<16x32xf32>
    %c0_3 = arith.constant 0 : index
    %c0_4 = arith.constant 0 : index
    %4 = vector.load %arg3[%c0_3, %c0_4] : memref<1x32xf32, #tpu.memory_space<vmem>>, vector<1x32xf32>
    %5 = vector.broadcast %4 : vector<1x32xf32> to vector<16x32xf32>
    %6 = arith.addf %3, %5 : vector<16x32xf32>
    %cst_5 = arith.constant 0.000000e+00 : f32
    %7 = vector.broadcast %cst_5 : f32 to vector<16x32xf32>
    %8 = arith.maximumf %6, %7 : vector<16x32xf32>
    %9 = arith.truncf %8 : vector<16x32xf32> to vector<16x32xbf16>
    %c0_6 = arith.constant 0 : index
    %c0_7 = arith.constant 0 : index
    %10 = vector.load %arg4[%c0_6, %c0_7] : memref<32x32xbf16, #tpu.memory_space<vmem>>, vector<32x32xbf16>
    %cst_8 = arith.constant dense<0.000000e+00> : vector<16x32xf32>
    %11 = tpu.matmul %9, %10, %cst_8 {dimension_numbers = #tpu.dot_dimension_numbers<[1], [0], [0], [1], [0, 0, 1, 1], [], []>} : vector<16x32xbf16>, vector<32x32xbf16>, vector<16x32xf32> -> vector<16x32xf32>
    %c0_9 = arith.constant 0 : index
    %c0_10 = arith.constant 0 : index
    %12 = vector.load %arg5[%c0_9, %c0_10] : memref<1x32xf32, #tpu.memory_space<vmem>>, vector<1x32xf32>
    %13 = vector.broadcast %12 : vector<1x32xf32> to vector<16x32xf32>
    %14 = arith.addf %11, %13 : vector<16x32xf32>
    %cst_11 = arith.constant 0.000000e+00 : f32
    %15 = vector.broadcast %cst_11 : f32 to vector<16x32xf32>
    %16 = arith.maximumf %14, %15 : vector<16x32xf32>
    %17 = arith.truncf %16 : vector<16x32xf32> to vector<16x32xbf16>
    %c0_12 = arith.constant 0 : index
    %c0_13 = arith.constant 0 : index
    %18 = vector.load %arg6[%c0_12, %c0_13] : memref<32x128xbf16, #tpu.memory_space<vmem>>, vector<32x128xbf16>
    %cst_14 = arith.constant dense<0.000000e+00> : vector<16x128xf32>
    %19 = tpu.matmul %17, %18, %cst_14 {dimension_numbers = #tpu.dot_dimension_numbers<[1], [0], [0], [1], [0, 0, 1, 1], [], []>} : vector<16x32xbf16>, vector<32x128xbf16>, vector<16x128xf32> -> vector<16x128xf32>
    %c0_15 = arith.constant 0 : index
    %c0_16 = arith.constant 0 : index
    %20 = vector.load %arg7[%c0_15, %c0_16] : memref<1x128xf32, #tpu.memory_space<vmem>>, vector<1x128xf32>
    %21 = vector.broadcast %20 : vector<1x128xf32> to vector<16x128xf32>
    %22 = arith.addf %19, %21 : vector<16x128xf32>
    %23 = tpu.iota {dimensions = array<i32: 1>} : vector<16x128xi32>
    %c4_i32 = arith.constant 4 : i32
    %24 = vector.broadcast %c4_i32 : i32 to vector<16x128xi32>
    %25 = arith.cmpi slt, %23, %24 : vector<16x128xi32>
    %cst_17 = arith.constant 0.000000e+00 : f32
    %26 = vector.broadcast %cst_17 : f32 to vector<16x128xf32>
    %27 = arith.select %25, %22, %26 : vector<16x128xi1>, vector<16x128xf32>
    %cst_18 = arith.constant dense<0.000000e+00> : vector<16xf32>
    %28 = vector.multi_reduction <add>, %27, %cst_18 [1] : vector<16x128xf32> to vector<16xf32>
    %29 = vector.shape_cast %28 : vector<16xf32> to vector<16x1xf32>
    %cst_19 = arith.constant 2.500000e-01 : f32
    %30 = vector.broadcast %cst_19 : f32 to vector<16x1xf32>
    %31 = arith.mulf %29, %30 : vector<16x1xf32>
    %c4_i32_20 = arith.constant 4 : i32
    %32 = vector.broadcast %c4_i32_20 : i32 to vector<16x128xi32>
    %33 = arith.cmpi eq, %23, %32 : vector<16x128xi32>
    %cst_21 = arith.constant 0.000000e+00 : f32
    %34 = vector.broadcast %cst_21 : f32 to vector<16x128xf32>
    %35 = arith.select %33, %22, %34 : vector<16x128xi1>, vector<16x128xf32>
    %cst_22 = arith.constant dense<0.000000e+00> : vector<16xf32>
    %36 = vector.multi_reduction <add>, %35, %cst_22 [1] : vector<16x128xf32> to vector<16xf32>
    %37 = vector.shape_cast %36 : vector<16xf32> to vector<16x1xf32>
    %38 = vector.broadcast %37 : vector<16x1xf32> to vector<16x128xf32>
    %39 = arith.addf %22, %38 : vector<16x128xf32>
    %40 = vector.broadcast %31 : vector<16x1xf32> to vector<16x128xf32>
    %41 = arith.subf %39, %40 : vector<16x128xf32>
    %c0_23 = arith.constant 0 : index
    %c0_24 = arith.constant 0 : index
    %42 = vector.load %arg8[%c0_23, %c0_24] : memref<16x128xf32, #tpu.memory_space<vmem>>, vector<16x128xf32>
    tpu.vector_store %arg8[%c0_23, %c0_24], %41 {strides = array<i32>} : memref<16x128xf32, #tpu.memory_space<vmem>>, vector<16x128xf32>,
    return
  }
  func.func @transform_0(%arg0: i32) -> (i32, i32) {
    %c0_i32 = arith.constant 0 : i32
    %c0_i32_0 = arith.constant 0 : i32
    return %arg0, %c0_i32 : i32, i32
  }
  func.func @transform_1(%arg0: i32) -> (i32, i32) {
    %c0_i32 = arith.constant 0 : i32
    %c0_i32_0 = arith.constant 0 : i32
    %c0_i32_1 = arith.constant 0 : i32
    return %c0_i32, %c0_i32_0 : i32, i32
  }
  func.func @transform_2(%arg0: i32) -> (i32, i32) {
    %c0_i32 = arith.constant 0 : i32
    %c0_i32_0 = arith.constant 0 : i32
    %c0_i32_1 = arith.constant 0 : i32
    return %c0_i32, %c0_i32_0 : i32, i32
  }
  func.func @transform_3(%arg0: i32) -> (i32, i32) {
    %c0_i32 = arith.constant 0 : i32
    %c0_i32_0 = arith.constant 0 : i32
    %c0_i32_1 = arith.constant 0 : i32
    return %c0_i32, %c0_i32_0 : i32, i32
  }
  func.func @transform_4(%arg0: i32) -> (i32, i32) {
    %c0_i32 = arith.constant 0 : i32
    %c0_i32_0 = arith.constant 0 : i32
    %c0_i32_1 = arith.constant 0 : i32
    return %c0_i32, %c0_i32_0 : i32, i32
  }
  func.func @transform_5(%arg0: i32) -> (i32, i32) {
    %c0_i32 = arith.constant 0 : i32
    %c0_i32_0 = arith.constant 0 : i32
    %c0_i32_1 = arith.constant 0 : i32
    return %c0_i32, %c0_i32_0 : i32, i32
  }
  func.func @transform_6(%arg0: i32) -> (i32, i32) {
    %c0_i32 = arith.constant 0 : i32
    %c0_i32_0 = arith.constant 0 : i32
    %c0_i32_1 = arith.constant 0 : i32
    return %c0_i32, %c0_i32_0 : i32, i32
  }
  func.func @transform_7(%arg0: i32) -> (i32, i32) {
    %c0_i32 = arith.constant 0 : i32
    %c0_i32_0 = arith.constant 0 : i32
    return %arg0, %c0_i32 : i32, i32
  }
}

</mosaic_0001>

<llo_original>
// kernel: tpu_custom_call.1
$region0: #{tpu_custom_call.1}
  #allocation0 [shape = 'u32[]', space=smem, size = 0x4, offset = 0x4, fixed_abs, tag = 'smem constant byte address 0x4 - core index']
  #allocation1 [shape = 'u32[72,128]{1,0:T(1,128)}', space=vmem, size = 0x9000, scoped, tag = 'internal scratch']
  %s0 = inlined_call_operand.vmem [shape: f32[16,8], index: 0, kind: input, shape index: {}]
  %s1 = inlined_call_operand.vmem [shape: bf16[8,32], index: 1, kind: input, shape index: {}]
  %s2 = inlined_call_operand.vmem [shape: f32[1,32], index: 2, kind: input, shape index: {}]
  %s3 = inlined_call_operand.vmem [shape: bf16[32,32], index: 3, kind: input, shape index: {}]
  %s4 = inlined_call_operand.vmem [shape: f32[1,32], index: 4, kind: input, shape index: {}]
  %s5 = inlined_call_operand.hbm [shape: bf16[32,128], index: 5, kind: input, shape index: {}]
  %s6 = inlined_call_operand.vmem [shape: f32[1,128], index: 6, kind: input, shape index: {}]
  %s7 = inlined_call_operand.hbm [shape: f32[16,128], index: 7, kind: output, shape index: {}]
  %s8 = sld [smem:[#allocation0]]
  $region42: #{tpu_custom_call.1} parent=0
    _
  %s10 = ssub.s32 1, %s8
  %s11 = scalar_select 0, %s10, %s8
  $region1: #{tpu_custom_call.1} parent=0
    #allocation2 [shape = 'u8[8192]{0}', space=vmem, size = 0x2000, scoped, tag = 'input window, operand 5, single buffered']
    #allocation3 [shape = 's32[1]{0}', space=sflag, size = 0x4, scoped, tag = 'scoped memory for tpu_custom_call.1']
    #allocation4 [shape = 's32[1]{0}', space=sflag, size = 0x4, scoped, tag = 'scoped memory for tpu_custom_call.1']
    #allocation5 [shape = 'u8[8192]{0}', space=vmem, size = 0x2000, scoped, tag = 'output window, operand 0, single buffered']
    %12 = vsyncpa [#allocation3], 0
    %13 = vsyncpa [#allocation4], 0
    // Predicated region
    $region2: #{tpu_custom_call.1} parent=1 // pred_check
      _
    $region3: #{tpu_custom_call.1} parent=1 // pred_check_branch
      %15 = sbr.rel (0) target = $region5
    $region4: #{tpu_custom_call.1} parent=1 // pred_region
      _
    $region5: #{tpu_custom_call.1} parent=1 // pred_fallthru
      _
    // Predicated region
    $region6: #{tpu_custom_call.1} parent=1 // pred_check
      _
    $region7: #{tpu_custom_call.1} parent=1 // pred_check_branch
      %17 = sbr.rel (0) target = $region9
    $region8: #{tpu_custom_call.1} parent=1 // pred_region
      _
    $region9: #{tpu_custom_call.1} parent=1 // pred_fallthru
      _
    // Predicated region
    $region10: #{tpu_custom_call.1} parent=1 // pred_check
      _
    $region11: #{tpu_custom_call.1} parent=1 // pred_check_branch
      %19 = sbr.rel (0) target = $region13
    $region12: #{tpu_custom_call.1} parent=1 // pred_region
      _
    $region13: #{tpu_custom_call.1} parent=1 // pred_fallthru
      _
    // Predicated region
    $region14: #{tpu_custom_call.1} parent=1 // pred_check
      _
    $region15: #{tpu_custom_call.1} parent=1 // pred_check_branch
      %21 = sbr.rel (0) target = $region17
    $region16: #{tpu_custom_call.1} parent=1 // pred_region
      _
    $region17: #{tpu_custom_call.1} parent=1 // pred_fallthru
      _
    // Predicated region
    $region18: #{tpu_custom_call.1} parent=1 // pred_check
      _
    $region19: #{tpu_custom_call.1} parent=1 // pred_check_branch
      %23 = sbr.rel (0) target = $region21
    $region20: #{tpu_custom_call.1} parent=1 // pred_region
      _
    $region21: #{tpu_custom_call.1} parent=1 // pred_fallthru
      _
    // Predicated region
    $region22: #{tpu_custom_call.1} parent=1 // pred_check
      _
    $region23: #{tpu_custom_call.1} parent=1 // pred_check_branch
      %25 = sbr.rel (0) target = $region25
    $region24: #{tpu_custom_call.1} parent=1 // pred_region
      %27 = vsyncadd [#allocation3], 0
      %s28 = sshll.u32 %s5, 4
      %s29 = int_to_ptr.hbm [resolvable:$true] %s28
      %s30 = sshll.u32 [#allocation2], 4
      %s31 = int_to_ptr.vmem [resolvable:$true] %s30
      %36 = dma.hbm_to_vmem [thread:$0]  %s29, 256, %s31, [#allocation3], 64, 64, 4
    $region25: #{tpu_custom_call.1} parent=1 // pred_fallthru
      _
    // Predicated region
    $region26: #{tpu_custom_call.1} parent=1 // pred_check
      _
    $region27: #{tpu_custom_call.1} parent=1 // pred_check_branch
      %38 = sbr.rel (0) target = $region29
    $region28: #{tpu_custom_call.1} parent=1 // pred_region
      _
    $region29: #{tpu_custom_call.1} parent=1 // pred_fallthru
      _
    // Predicated region
    $region30: #{tpu_custom_call.1} parent=1 // pred_check
      _
    $region31: #{tpu_custom_call.1} parent=1 // pred_check_branch
      %40 = sbr.rel (0) target = $region33
    $region32: #{tpu_custom_call.1} parent=1 // pred_region
      %42 = dma.done [#allocation3], 256
    $region33: #{tpu_custom_call.1} parent=1 // pred_fallthru
      _
    %v44 = vld [vmem:[%s0] sm:$0xff]
    %v45 = vld [vmem:[%s0 + $0x8] sm:$0xff]
    %v46 = vpack.c.bf16 %v45, %v44
    %v47 = vld [vmem:[%s1] sm:$0xf]
    %v48 = vld [vmem:[%s2] sm:$0x1]
    %v50 = vperm.slane %v48, 0
    %vm52 = vcmask 64512
    %v54 = vsel %vm52, %v46, 0
    %vm56 = vcmask 1043456
    %v58 = vsel %vm56, %v47, 0
    %60 = vmatpush.bf16.msra.mxu0 0
    %61 = vmatpush.bf16.msra.mxu0 0
    %62 = vmatpush.bf16.msra.mxu0 0
    %63 = vmatpush.bf16.msra.mxu0 0
    %64 = vmatpush.bf16.msra.mxu0 0
    %65 = vmatpush.bf16.msra.mxu0 0
    %66 = vmatpush.bf16.msra.mxu0 0
    %67 = vmatpush.bf16.msra.mxu0 %v58
    %68 = vmatmul.bf16.gmra.mxu0 %v54
    %v69 = vpop.f32.mrf.mxu0
    %v70 = vadd.f32 %v50, %v69
    %v71 = vpop.f32.mrf.mxu0
    %v72 = vadd.f32 %v50, %v71
    %73 = vdwg.mxu0
    %v74 = vmax.f32 %v70, 0.0
    %v75 = vmax.f32 %v72, 0.0
    %v76 = vpack.c.bf16 %v75, %v74
    %v77 = vld [vmem:[%s3] sm:$0xf]
    %v78 = vld [vmem:[%s3 + $0x4] sm:$0xf]
    %v79 = vld [vmem:[%s3 + $0x8] sm:$0xf]
    %v80 = vld [vmem:[%s3 + $0xc] sm:$0xf]
    %v81 = vld [vmem:[%s4] sm:$0x1]
    %v83 = vperm.slane %v81, 0
    %v89 = vunpack.c.l.b16 %v77
    %v90 = vunpack.c.l.b16 %v78
    %v91 = vunpack.c.l.b16 %v79
    %v92 = vunpack.c.l.b16 %v80
    %v93 = vpack.c.b16 %v90, %v89
    %v94 = vpack.c.b16 %v92, %v91
    %vm97 = vcmask 261120
    %v99 = vsel %vm97, %v76, 0
    %101 = vmatpush.bf16.msra.mxu0 0
    %102 = vmatpush.bf16.msra.mxu0 0
    %103 = vmatpush.bf16.msra.mxu0 0
    %104 = vmatpush.bf16.msra.mxu0 0
    %105 = vmatpush.bf16.msra.mxu0 0
    %106 = vmatpush.bf16.msra.mxu0 0
    %107 = vmatpush.bf16.msra.mxu0 %v94
    %108 = vmatpush.bf16.msra.mxu0 %v93
    %109 = vmatmul.bf16.gmra.mxu0 %v99
    %v110 = vpop.f32.mrf.mxu0
    %v111 = vadd.f32 %v83, %v110
    %v112 = vpop.f32.mrf.mxu0
    %v113 = vadd.f32 %v83, %v112
    %114 = vdwg.mxu0
    %v115 = vmax.f32 %v111, 0.0
    %v116 = vmax.f32 %v113, 0.0
    %v117 = vpack.c.bf16 %v116, %v115
    %v118 = vld [vmem:[#allocation2] sm:$0xf]
    %v119 = vld [vmem:[#allocation2 + $0x4] sm:$0xf]
    %v120 = vld [vmem:[#allocation2 + $0x8] sm:$0xf]
    %v121 = vld [vmem:[#allocation2 + $0xc] sm:$0xf]
    %v122 = vld [vmem:[%s6] sm:$0x1]
    %v124 = vperm.slane %v122, 0
    %v130 = vunpack.c.l.b16 %v118
    %v131 = vunpack.c.l.b16 %v119
    %v132 = vunpack.c.l.b16 %v120
    %v133 = vunpack.c.l.b16 %v121
    %v134 = vpack.c.b16 %v131, %v130
    %v135 = vpack.c.b16 %v133, %v132
    %v139 = vsel %vm97, %v117, 0
    %141 = vmatpush.bf16.msra.mxu0 0
    %142 = vmatpush.bf16.msra.mxu0 0
    %143 = vmatpush.bf16.msra.mxu0 0
    %144 = vmatpush.bf16.msra.mxu0 0
    %145 = vmatpush.bf16.msra.mxu0 0
    %146 = vmatpush.bf16.msra.mxu0 0
    %147 = vmatpush.bf16.msra.mxu0 %v135
    %148 = vmatpush.bf16.msra.mxu0 %v134
    %149 = vmatmul.bf16.gmra.mxu0 %v139
    %v150 = vpop.f32.mrf.mxu0
    %v151 = vadd.f32 %v124, %v150
    %v152 = vpop.f32.mrf.mxu0
    %v153 = vadd.f32 %v124, %v152
    %154 = vdwg.mxu0
    %v155 = vlaneseq
    %v156 = vand.u32 %v155, 127
    %vm157 = vcmp.lt.s32.totalorder %v156, 4
    %v158 = vsel %vm157, %v151, 0.0
    %v159 = vsel %vm157, %v153, 0.0
    %160 = vadd.xlane.f32.xlu0 %v158
    %v161 = vpop.xlane.xlu0 %160
    %162 = vadd.xlane.f32.xlu0 %v159
    %v163 = vpop.xlane.xlu0 %162
    %v164 = vmul.f32 %v161, 0.25
    %v165 = vmul.f32 %v163, 0.25
    %vm166 = vcmp.eq.s32.totalorder %v156, 4
    %v167 = vsel %vm166, %v151, 0.0
    %v168 = vsel %vm166, %v153, 0.0
    %169 = vadd.xlane.f32.xlu0 %v167
    %v170 = vpop.xlane.xlu0 %169
    %171 = vadd.xlane.f32.xlu0 %v168
    %v172 = vpop.xlane.xlu0 %171
    %v173 = vadd.f32 %v151, %v170
    %v174 = vadd.f32 %v153, %v172
    %v175 = vsub.f32 %v173, %v164
    %v176 = vsub.f32 %v174, %v165
    %177 = vst [vmem:[#allocation5] sm:$0xff] %v175
    %178 = vst [vmem:[#allocation5 + $0x8] sm:$0xff] %v176
    // Predicated region
    $region34: #{tpu_custom_call.1} parent=1 // pred_check
      _
    $region35: #{tpu_custom_call.1} parent=1 // pred_check_branch
      %180 = sbr.rel (0) target = $region37
    $region36: #{tpu_custom_call.1} parent=1 // pred_region
      %182 = vsyncadd [#allocation4], 0
      %s183 = sshll.u32 [#allocation5], 4
      %s184 = int_to_ptr.vmem [resolvable:$true] %s183
      %s185 = sshll.u32 %s7, 4
      %s186 = int_to_ptr.hbm [resolvable:$true] %s185
      %191 = dma.vmem_to_hbm [thread:$0]  %s184, 256, %s186, [#allocation4], 128, 128, 8
    $region37: #{tpu_custom_call.1} parent=1 // pred_fallthru
      _
    // Predicated region
    $region38: #{tpu_custom_call.1} parent=1 // pred_check
      _
    $region39: #{tpu_custom_call.1} parent=1 // pred_check_branch
      %193 = sbr.rel (0) target = $region41
    $region40: #{tpu_custom_call.1} parent=1 // pred_region
      %195 = dma.done [#allocation4], 256
    $region41: #{tpu_custom_call.1} parent=1 // pred_fallthru
      _
    %196 = vsyncpa [#allocation3], 1
    %197 = vsyncpa [#allocation4], 1

</llo_original>
